<compile_context>
chip_gen: v6e
topology: v6e:2x2x1
jax: 0.10.0
libtpu: 0.0.40
codegen_flags: <defaults>
</compile_context>

<pallas_src>
from functools import partial

import jax
import jax.numpy as jnp
from jax.experimental import pallas as pl
from jax.experimental.pallas import tpu as pltpu


def _round_up(x, m):
    return ((x + m - 1) // m) * m


def _pad2d(x, rows, cols):
    return jnp.pad(x, ((0, rows - x.shape[0]), (0, cols - x.shape[1])))


def _gsr_kernel(w_ref, u_ref, f_ref, adj_ref, x_ref, *, lr_p, diag_len, reassociate):
    # w_ref: (hr_p, 2*lr_p)  -- W[:, :lr] in the first lr_p lanes, W[:, lr:] in the rest.
    # u_ref: (lr_p, lr_p)    -- U_lr (untransposed), zero padded.
    # f_ref: (lr_p, fd_p)    -- X, zero padded.

    # a = W @ [I; I]  ==  W[:, :lr] + W[:, lr:]   (lane-aligned VPU add, no MXU pass)
    a = w_ref[:, :lr_p] + w_ref[:, lr_p:]                       # (hr_p, lr_p)
    u = u_ref[...]
    f = f_ref[...]

    if reassociate:
        # c = U^T @ f, then fd = a @ c   (fewer MACs when f_dim < hr_dim)
        c = jax.lax.dot_general(u, f, (((0,), (0,)), ((), ())),
                                preferred_element_type=jnp.float32)
        fd = jnp.dot(a, c, preferred_element_type=jnp.float32)
    else:
        # b = a @ U^T (transpose expressed as a contraction), then fd = b @ f
        b = jax.lax.dot_general(a, u, (((1,), (1,)), ((), ())),
                                preferred_element_type=jnp.float32)
        fd = jnp.dot(b, f, preferred_element_type=jnp.float32)

    # fd = abs(fd); fd.fill_diagonal_(1)  (only the real diagonal, not padding)
    fd = jnp.abs(fd)
    rows = jax.lax.broadcasted_iota(jnp.int32, fd.shape, 0)
    cols = jax.lax.broadcasted_iota(jnp.int32, fd.shape, 1)
    fd = jnp.where((rows == cols) & (rows < diag_len), jnp.float32(1.0), fd)
    adj_ref[...] = fd

    # X = adj @ adj^T  (exactly symmetric and >= 0, so (X+X^T)/2 and abs are no-ops);
    # then X.fill_diagonal_(1).
    x = jax.lax.dot_general(fd, fd, (((1,), (1,)), ((), ())),
                            preferred_element_type=jnp.float32)
    r2 = jax.lax.broadcasted_iota(jnp.int32, x.shape, 0)
    c2 = jax.lax.broadcasted_iota(jnp.int32, x.shape, 1)
    x_ref[...] = jnp.where(r2 == c2, jnp.float32(1.0), x)


def gsr_layer(A, X, weights):
    """Forward of GSRLayer. A: (lr, lr), X: (lr, fd), weights: (hr, hr), hr = 2*lr."""
    A = A.astype(jnp.float32)
    X = X.astype(jnp.float32)
    W = weights.astype(jnp.float32)

    lr = A.shape[0]
    hr = W.shape[0]
    fd = X.shape[1]
    assert hr == 2 * lr, "GSRLayer requires hr_dim == 2 * lr_dim"
    assert X.shape[0] == lr

    # TODO(synk): torch.linalg.eigh has no Pallas equivalent; computed with plain JAX.
    _, U_lr = jnp.linalg.eigh(A, UPLO="U", symmetrize_input=False)

    # Pad every dim to a multiple of 128 so all kernel last dims are lane-dense.
    LANE = 128
    lr_p = _round_up(lr, LANE)
    hr_p = _round_up(hr, LANE)
    fd_p = _round_up(fd, LANE)

    # Split-and-pad W so the in-kernel column-half add uses lane-aligned slices:
    #   w_pad[:, :lr_p]  <- W[:, :lr]
    #   w_pad[:, lr_p:]  <- W[:, lr:]
    w_pad = jnp.zeros((hr_p, 2 * lr_p), jnp.float32)
    w_pad = w_pad.at[:hr, :lr].set(W[:, :lr]).at[:hr, lr_p:lr_p + lr].set(W[:, lr:])
    u_pad = _pad2d(U_lr.astype(jnp.float32), lr_p, lr_p)
    f_pad = _pad2d(X, lr_p, fd_p)

    reassociate = fd < hr
    diag_len = min(hr, fd)  # fill_diagonal_ touches only min(rows, cols) entries

    kernel = partial(_gsr_kernel, lr_p=lr_p, diag_len=diag_len,
                     reassociate=reassociate)

    if reassociate:
        mm_flops = 2 * (lr_p * lr_p * fd_p + hr_p * lr_p * fd_p)
    else:
        mm_flops = 2 * (hr_p * lr_p * lr_p + hr_p * lr_p * fd_p)
    mm_flops += 2 * hr_p * fd_p * hr_p  # Gram matrix
    bytes_accessed = 4 * (hr_p * 2 * lr_p + lr_p * lr_p + lr_p * fd_p
                          + hr_p * fd_p + hr_p * hr_p)

    vmem = pl.BlockSpec(memory_space=pltpu.MemorySpace.VMEM)
    adj_p, x_p = pl.pallas_call(
        kernel,
        out_shape=(
            jax.ShapeDtypeStruct((hr_p, fd_p), jnp.float32),
            jax.ShapeDtypeStruct((hr_p, hr_p), jnp.float32),
        ),
        in_specs=[vmem, vmem, vmem],
        out_specs=(vmem, vmem),
        cost_estimate=pl.CostEstimate(flops=mm_flops, transcendentals=0,
                                      bytes_accessed=bytes_accessed),
    )(w_pad, u_pad, f_pad)

    return adj_p[:hr, :fd], x_p[:hr, :hr]


def gsr_reference(A, X, W):
    """Pure-JAX reference following the PyTorch module literally."""
    lr = A.shape[0]
    _, U = jnp.linalg.eigh(A, UPLO="U", symmetrize_input=False)
    eye = jnp.eye(lr, dtype=jnp.float32)
    s_d = jnp.concatenate([eye, eye], axis=0)
    hi = jax.lax.Precision.HIGHEST
    a = jnp.matmul(W, s_d, precision=hi)
    b = jnp.matmul(a, U.T, precision=hi)
    f_d = jnp.abs(jnp.matmul(b, X, precision=hi))
    n = min(f_d.shape)
    idx = jnp.arange(n)
    f_d = f_d.at[idx, idx].set(1.0)
    adj = f_d
    Xo = jnp.matmul(adj, adj.T, precision=hi)
    Xo = (Xo + Xo.T) / 2.0
    m = jnp.arange(Xo.shape[0])
    Xo = Xo.at[m, m].set(1.0)
    return adj, jnp.abs(Xo)


def weight_variable_glorot(dim, key):
    init_range = jnp.sqrt(6.0 / (dim + dim))
    return jax.random.uniform(
        key, (dim, dim), dtype=jnp.float32, minval=-init_range, maxval=init_range
    )


if __name__ == "__main__":
    key = jax.random.PRNGKey(0)
    k_a, k_x, k_w = jax.random.split(key, 3)

    lr_dim = 16
    hr_dim = 2 * lr_dim          # 32 — required so the W @ [I;I] step is valid
    f_dim = hr_dim               # AGSR passes hr_dim-wide features

    A0 = jax.random.normal(k_a, (lr_dim, lr_dim), dtype=jnp.float32)
    A = (A0 + A0.T) * 0.5                       # symmetric low-res adjacency
    X = jax.random.normal(k_x, (lr_dim, f_dim), dtype=jnp.float32)
    W = weight_variable_glorot(hr_dim, k_w)     # deterministic glorot init

    adj, x_out = gsr_layer(A, X, W)
    jax.block_until_ready((adj, x_out))

    assert adj.shape == (hr_dim, f_dim)
    assert x_out.shape == (hr_dim, hr_dim)

    # Validate against a literal pure-JAX port of the PyTorch forward.
    adj_ref, x_ref = gsr_reference(A, X, W)
    tol_adj = 1e-2 * (1.0 + float(jnp.max(jnp.abs(adj_ref))))
    tol_x = 1e-2 * (1.0 + float(jnp.max(jnp.abs(x_ref))))
    assert float(jnp.max(jnp.abs(adj - adj_ref))) <= tol_adj
    assert float(jnp.max(jnp.abs(x_out - x_ref))) <= tol_x

    print("KERNEL_OK")
</pallas_src>

<mosaic_0001>
module attributes {stable_mosaic.version = 11 : i64} {
  func.func @_gsr_kernel(%arg0: memref<128x256xf32, #tpu.memory_space<vmem>>, %arg1: memref<128x128xf32, #tpu.memory_space<vmem>>, %arg2: memref<128x128xf32, #tpu.memory_space<vmem>>, %arg3: memref<128x128xf32, #tpu.memory_space<vmem>>, %arg4: memref<128x128xf32, #tpu.memory_space<vmem>>) attributes {dimension_semantics = [], scalar_prefetch = 0 : i64, scratch_operands = 0 : i64, tpu.core_type = #tpu.core_type<tc>} {
    %c0 = arith.constant 0 : index
    %c0_0 = arith.constant 0 : index
    %0 = vector.load %arg0[%c0, %c0_0] : memref<128x256xf32, #tpu.memory_space<vmem>>, vector<128x128xf32>
    %c0_1 = arith.constant 0 : index
    %c128 = arith.constant 128 : index
    %1 = vector.load %arg0[%c0_1, %c128] : memref<128x256xf32, #tpu.memory_space<vmem>>, vector<128x128xf32>
    %2 = arith.addf %0, %1 : vector<128x128xf32>
    %c0_2 = arith.constant 0 : index
    %c0_3 = arith.constant 0 : index
    %3 = vector.load %arg1[%c0_2, %c0_3] : memref<128x128xf32, #tpu.memory_space<vmem>>, vector<128x128xf32>
    %c0_4 = arith.constant 0 : index
    %c0_5 = arith.constant 0 : index
    %4 = vector.load %arg2[%c0_4, %c0_5] : memref<128x128xf32, #tpu.memory_space<vmem>>, vector<128x128xf32>
    %cst = arith.constant dense<0.000000e+00> : vector<128x128xf32>
    %5 = tpu.matmul %2, %3, %cst {dimension_numbers = #tpu.dot_dimension_numbers<[1], [1], [0], [0], [0, 0, 1, 0], [], []>} : vector<128x128xf32>, vector<128x128xf32>, vector<128x128xf32> -> vector<128x128xf32>
    %cst_6 = arith.constant dense<0.000000e+00> : vector<128x128xf32>
    %6 = tpu.matmul %5, %4, %cst_6 {dimension_numbers = #tpu.dot_dimension_numbers<[1], [0], [0], [1], [0, 0, 1, 1], [], []>} : vector<128x128xf32>, vector<128x128xf32>, vector<128x128xf32> -> vector<128x128xf32>
    %7 = math.absf %6 : vector<128x128xf32>
    %8 = tpu.iota {dimensions = array<i32: 0>} : vector<128x128xi32>
    %9 = tpu.iota {dimensions = array<i32: 1>} : vector<128x128xi32>
    %10 = arith.cmpi eq, %8, %9 : vector<128x128xi32>
    %c32_i32 = arith.constant 32 : i32
    %11 = vector.broadcast %c32_i32 : i32 to vector<128x128xi32>
    %12 = arith.cmpi slt, %8, %11 : vector<128x128xi32>
    %13 = arith.andi %10, %12 : vector<128x128xi1>
    %cst_7 = arith.constant 1.000000e+00 : f32
    %14 = vector.broadcast %cst_7 : f32 to vector<128x128xf32>
    %15 = arith.select %13, %14, %7 : vector<128x128xi1>, vector<128x128xf32>
    %c0_8 = arith.constant 0 : index
    %c0_9 = arith.constant 0 : index
    %16 = vector.load %arg3[%c0_8, %c0_9] : memref<128x128xf32, #tpu.memory_space<vmem>>, vector<128x128xf32>
    tpu.vector_store %arg3[%c0_8, %c0_9], %15 {strides = array<i32>} : memref<128x128xf32, #tpu.memory_space<vmem>>, vector<128x128xf32>,
    %cst_10 = arith.constant dense<0.000000e+00> : vector<128x128xf32>
    %17 = tpu.matmul %15, %15, %cst_10 {dimension_numbers = #tpu.dot_dimension_numbers<[1], [1], [0], [0], [0, 0, 1, 0], [], []>} : vector<128x128xf32>, vector<128x128xf32>, vector<128x128xf32> -> vector<128x128xf32>
    %18 = tpu.iota {dimensions = array<i32: 0>} : vector<128x128xi32>
    %19 = tpu.iota {dimensions = array<i32: 1>} : vector<128x128xi32>
    %20 = arith.cmpi eq, %18, %19 : vector<128x128xi32>
    %cst_11 = arith.constant 1.000000e+00 : f32
    %21 = vector.broadcast %cst_11 : f32 to vector<128x128xf32>
    %22 = arith.select %20, %21, %17 : vector<128x128xi1>, vector<128x128xf32>
    %c0_12 = arith.constant 0 : index
    %c0_13 = arith.constant 0 : index
    %23 = vector.load %arg4[%c0_12, %c0_13] : memref<128x128xf32, #tpu.memory_space<vmem>>, vector<128x128xf32>
    tpu.vector_store %arg4[%c0_12, %c0_13], %22 {strides = array<i32>} : memref<128x128xf32, #tpu.memory_space<vmem>>, vector<128x128xf32>,
    return
  }
}

</mosaic_0001>

<llo_original>
// kernel: tpu_custom_call.1
$region0: #{tpu_custom_call.1}
  #allocation0 [shape = 'u32[]', space=smem, size = 0x4, offset = 0x4, fixed_abs, tag = 'smem constant byte address 0x4 - core index']
  #allocation1 [shape = 'u32[144,128]{1,0:T(1,128)}', space=vmem, size = 0x12000, scoped, tag = 'internal scratch']
  %s0 = inlined_call_operand.hbm [shape: f32[128,256], index: 0, kind: input, shape index: {}]
  %s1 = inlined_call_operand.hbm [shape: f32[128,128], index: 1, kind: input, shape index: {}]
  %s2 = inlined_call_operand.hbm [shape: f32[128,128], index: 2, kind: input, shape index: {}]
  %s3 = inlined_call_operand.hbm [shape: f32[128,128], index: 3, kind: output, shape index: {0}]
  %s4 = inlined_call_operand.hbm [shape: f32[128,128], index: 4, kind: output, shape index: {1}]
  %5 = xla_tuple %s3, %s4
  %s6 = sld [smem:[#allocation0]]
  $region42: #{tpu_custom_call.1} parent=0
    _
  %s8 = ssub.s32 1, %s6
  %s9 = scalar_select 0, %s8, %s6
  $region1: #{tpu_custom_call.1} parent=0
    #allocation2 [shape = 'u8[131072]{0}', space=vmem, size = 0x20000, scoped, tag = 'input window, operand 0, single buffered']
    #allocation3 [shape = 's32[1]{0}', space=sflag, size = 0x4, scoped, tag = 'scoped memory for tpu_custom_call.1']
    #allocation4 [shape = 's32[1]{0}', space=sflag, size = 0x4, scoped, tag = 'scoped memory for tpu_custom_call.1']
    #allocation5 [shape = 'u8[65536]{0}', space=vmem, size = 0x10000, scoped, tag = 'input window, operand 1, single buffered']
    #allocation6 [shape = 's32[1]{0}', space=sflag, size = 0x4, scoped, tag = 'scoped memory for tpu_custom_call.1']
    #allocation7 [shape = 'u8[65536]{0}', space=vmem, size = 0x10000, scoped, tag = 'input window, operand 2, single buffered']
    #allocation8 [shape = 'u8[65536]{0}', space=vmem, size = 0x10000, scoped, tag = 'output window, operand 0, single buffered']
    #allocation9 [shape = 'u8[65536]{0}', space=vmem, size = 0x10000, scoped, tag = 'output window, operand 1, single buffered']
    #allocation10 [shape = 's32[1]{0}', space=sflag, size = 0x4, scoped, tag = 'scoped memory for tpu_custom_call.1']
    %10 = vsyncpa [#allocation3], 0
    %11 = vsyncpa [#allocation6], 0
    %12 = vsyncpa [#allocation4], 0
    %13 = vsyncpa [#allocation10], 0
    // Predicated region
    $region2: #{tpu_custom_call.1} parent=1 // pred_check
      _
    $region3: #{tpu_custom_call.1} parent=1 // pred_check_branch
      %15 = sbr.rel (0) target = $region5
    $region4: #{tpu_custom_call.1} parent=1 // pred_region
      %s17 = ssub.s32 4096, 4096
      %18 = vsyncadd [#allocation3], %s17
      %s19 = sshll.u32 [#allocation2], 4
      %s20 = int_to_ptr.vmem [resolvable:$true] %s19
      %25 = dma.hbm_to_vmem [thread:$0]  %s0, 4096, %s20, [#allocation3], 256, 256, 16
    $region5: #{tpu_custom_call.1} parent=1 // pred_fallthru
      _
    // Predicated region
    $region6: #{tpu_custom_call.1} parent=1 // pred_check
      _
    $region7: #{tpu_custom_call.1} parent=1 // pred_check_branch
      %27 = sbr.rel (0) target = $region9
    $region8: #{tpu_custom_call.1} parent=1 // pred_region
      %s29 = ssub.s32 2048, 2048
      %30 = vsyncadd [#allocation6], %s29
      %s31 = sshll.u32 [#allocation5], 4
      %s32 = int_to_ptr.vmem [resolvable:$true] %s31
      %37 = dma.hbm_to_vmem [thread:$0]  %s1, 2048, %s32, [#allocation6], 128, 128, 8
    $region9: #{tpu_custom_call.1} parent=1 // pred_fallthru
      _
    // Predicated region
    $region10: #{tpu_custom_call.1} parent=1 // pred_check
      _
    $region11: #{tpu_custom_call.1} parent=1 // pred_check_branch
      %39 = sbr.rel (0) target = $region13
    $region12: #{tpu_custom_call.1} parent=1 // pred_region
      %s41 = ssub.s32 2048, 2048
      %42 = vsyncadd [#allocation6], %s41
      %s43 = sshll.u32 [#allocation7], 4
      %s44 = int_to_ptr.vmem [resolvable:$true] %s43
      %49 = dma.hbm_to_vmem [thread:$0]  %s2, 2048, %s44, [#allocation6], 128, 128, 8
    $region13: #{tpu_custom_call.1} parent=1 // pred_fallthru
      _
    // Predicated region
    $region14: #{tpu_custom_call.1} parent=1 // pred_check
      _
    $region15: #{tpu_custom_call.1} parent=1 // pred_check_branch
      %51 = sbr.rel (0) target = $region17
    $region16: #{tpu_custom_call.1} parent=1 // pred_region
      %52 = dma.done [#allocation3], 4096
    $region17: #{tpu_custom_call.1} parent=1 // pred_fallthru
      _
    // Predicated region
    $region18: #{tpu_custom_call.1} parent=1 // pred_check
      _
    $region19: #{tpu_custom_call.1} parent=1 // pred_check_branch
      %54 = sbr.rel (0) target = $region21
    $region20: #{tpu_custom_call.1} parent=1 // pred_region
      %55 = dma.done [#allocation6], 2048
    $region21: #{tpu_custom_call.1} parent=1 // pred_fallthru
      _
    // Predicated region
    $region22: #{tpu_custom_call.1} parent=1 // pred_check
      _
    $region23: #{tpu_custom_call.1} parent=1 // pred_check_branch
      %57 = sbr.rel (0) target = $region25
    $region24: #{tpu_custom_call.1} parent=1 // pred_region
      %58 = dma.done [#allocation6], 2048
    $region25: #{tpu_custom_call.1} parent=1 // pred_fallthru
      _
    %v59 = vld [vmem:[#allocation2] sm:$0xff]
    %v60 = vld [vmem:[#allocation2 + $0x10] sm:$0xff]
    %v61 = vld [vmem:[#allocation2 + $0x20] sm:$0xff]
    %v62 = vld [vmem:[#allocation2 + $0x30] sm:$0xff]
    %v63 = vld [vmem:[#allocation2 + $0x40] sm:$0xff]
    %v64 = vld [vmem:[#allocation2 + $0x50] sm:$0xff]
    %v65 = vld [vmem:[#allocation2 + $0x60] sm:$0xff]
    %v66 = vld [vmem:[#allocation2 + $0x70] sm:$0xff]
    %v67 = vld [vmem:[#allocation2 + $0x80] sm:$0xff]
    %v68 = vld [vmem:[#allocation2 + $0x90] sm:$0xff]
    %v69 = vld [vmem:[#allocation2 + $0xa0] sm:$0xff]
    %v70 = vld [vmem:[#allocation2 + $0xb0] sm:$0xff]
    %v71 = vld [vmem:[#allocation2 + $0xc0] sm:$0xff]
    %v72 = vld [vmem:[#allocation2 + $0xd0] sm:$0xff]
    %v73 = vld [vmem:[#allocation2 + $0xe0] sm:$0xff]
    %v74 = vld [vmem:[#allocation2 + $0xf0] sm:$0xff]
    %v75 = vld [vmem:[#allocation2 + $0x8] sm:$0xff]
    %v76 = vld [vmem:[#allocation2 + $0x18] sm:$0xff]
    %v77 = vld [vmem:[#allocation2 + $0x28] sm:$0xff]
    %v78 = vld [vmem:[#allocation2 + $0x38] sm:$0xff]
    %v79 = vld [vmem:[#allocation2 + $0x48] sm:$0xff]
    %v80 = vld [vmem:[#allocation2 + $0x58] sm:$0xff]
    %v81 = vld [vmem:[#allocation2 + $0x68] sm:$0xff]
    %v82 = vld [vmem:[#allocation2 + $0x78] sm:$0xff]
    %v83 = vld [vmem:[#allocation2 + $0x88] sm:$0xff]
    %v84 = vld [vmem:[#allocation2 + $0x98] sm:$0xff]
    %v85 = vld [vmem:[#allocation2 + $0xa8] sm:$0xff]
    %v86 = vld [vmem:[#allocation2 + $0xb8] sm:$0xff]
    %v87 = vld [vmem:[#allocation2 + $0xc8] sm:$0xff]
    %v88 = vld [vmem:[#allocation2 + $0xd8] sm:$0xff]
    %v89 = vld [vmem:[#allocation2 + $0xe8] sm:$0xff]
    %v90 = vld [vmem:[#allocation2 + $0xf8] sm:$0xff]
    %v91 = vadd.f32 %v59, %v75
    %v92 = vadd.f32 %v60, %v76
    %v93 = vadd.f32 %v61, %v77
    %v94 = vadd.f32 %v62, %v78
    %v95 = vadd.f32 %v63, %v79
    %v96 = vadd.f32 %v64, %v80
    %v97 = vadd.f32 %v65, %v81
    %v98 = vadd.f32 %v66, %v82
    %v99 = vadd.f32 %v67, %v83
    %v100 = vadd.f32 %v68, %v84
    %v101 = vadd.f32 %v69, %v85
    %v102 = vadd.f32 %v70, %v86
    %v103 = vadd.f32 %v71, %v87
    %v104 = vadd.f32 %v72, %v88
    %v105 = vadd.f32 %v73, %v89
    %v106 = vadd.f32 %v74, %v90
    %v107 = vld [vmem:[#allocation5] sm:$0xff]
    %v108 = vld [vmem:[#allocation5 + $0x8] sm:$0xff]
    %v109 = vld [vmem:[#allocation5 + $0x10] sm:$0xff]
    %v110 = vld [vmem:[#allocation5 + $0x18] sm:$0xff]
    %v111 = vld [vmem:[#allocation5 + $0x20] sm:$0xff]
    %v112 = vld [vmem:[#allocation5 + $0x28] sm:$0xff]
    %v113 = vld [vmem:[#allocation5 + $0x30] sm:$0xff]
    %v114 = vld [vmem:[#allocation5 + $0x38] sm:$0xff]
    %v115 = vld [vmem:[#allocation5 + $0x40] sm:$0xff]
    %v116 = vld [vmem:[#allocation5 + $0x48] sm:$0xff]
    %v117 = vld [vmem:[#allocation5 + $0x50] sm:$0xff]
    %v118 = vld [vmem:[#allocation5 + $0x58] sm:$0xff]
    %v119 = vld [vmem:[#allocation5 + $0x60] sm:$0xff]
    %v120 = vld [vmem:[#allocation5 + $0x68] sm:$0xff]
    %v121 = vld [vmem:[#allocation5 + $0x70] sm:$0xff]
    %v122 = vld [vmem:[#allocation5 + $0x78] sm:$0xff]
    %v123 = vld [vmem:[#allocation7] sm:$0xff]
    %v124 = vld [vmem:[#allocation7 + $0x8] sm:$0xff]
    %v125 = vld [vmem:[#allocation7 + $0x10] sm:$0xff]
    %v126 = vld [vmem:[#allocation7 + $0x18] sm:$0xff]
    %v127 = vld [vmem:[#allocation7 + $0x20] sm:$0xff]
    %v128 = vld [vmem:[#allocation7 + $0x28] sm:$0xff]
    %v129 = vld [vmem:[#allocation7 + $0x30] sm:$0xff]
    %v130 = vld [vmem:[#allocation7 + $0x38] sm:$0xff]
    %v131 = vld [vmem:[#allocation7 + $0x40] sm:$0xff]
    %v132 = vld [vmem:[#allocation7 + $0x48] sm:$0xff]
    %v133 = vld [vmem:[#allocation7 + $0x50] sm:$0xff]
    %v134 = vld [vmem:[#allocation7 + $0x58] sm:$0xff]
    %v135 = vld [vmem:[#allocation7 + $0x60] sm:$0xff]
    %v136 = vld [vmem:[#allocation7 + $0x68] sm:$0xff]
    %v137 = vld [vmem:[#allocation7 + $0x70] sm:$0xff]
    %v138 = vld [vmem:[#allocation7 + $0x78] sm:$0xff]
    %139 = vmatprep.subr.mxu0 0.0
    %140 = vmatpush1.xpose.msra.mxu0 %v122
    %141 = vmatprep.subr.mxu0 0.0
    %142 = vmatpush1.xpose.msra.mxu0 %v121
    %143 = vmatprep.subr.mxu0 0.0
    %144 = vmatpush1.xpose.msra.mxu0 %v120
    %145 = vmatprep.subr.mxu0 0.0
    %146 = vmatpush1.xpose.msra.mxu0 %v119
    %147 = vmatprep.subr.mxu0 0.0
    %148 = vmatpush1.xpose.msra.mxu0 %v118
    %149 = vmatprep.subr.mxu0 0.0
    %150 = vmatpush1.xpose.msra.mxu0 %v117
    %151 = vmatprep.subr.mxu0 0.0
    %152 = vmatpush1.xpose.msra.mxu0 %v116
    %153 = vmatprep.subr.mxu0 0.0
    %154 = vmatpush1.xpose.msra.mxu0 %v115
    %155 = vmatprep.subr.mxu0 0.0
    %156 = vmatpush1.xpose.msra.mxu0 %v114
    %157 = vmatprep.subr.mxu0 0.0
    %158 = vmatpush1.xpose.msra.mxu0 %v113
    %159 = vmatprep.subr.mxu0 0.0
    %160 = vmatpush1.xpose.msra.mxu0 %v112
    %161 = vmatprep.subr.mxu0 0.0
    %162 = vmatpush1.xpose.msra.mxu0 %v111
    %163 = vmatprep.subr.mxu0 0.0
    %164 = vmatpush1.xpose.msra.mxu0 %v110
    %165 = vmatprep.subr.mxu0 0.0
    %166 = vmatpush1.xpose.msra.mxu0 %v109
    %167 = vmatprep.subr.mxu0 0.0
    %168 = vmatpush1.xpose.msra.mxu0 %v108
    %169 = vmatprep.subr.mxu0 0.0
    %170 = vmatpush1.xpose.msra.mxu0 %v107
    %171 = vmatprep.subr.mxu0 0.0
    %172 = vmatpush2.xpose.msra.mxu0 0.0
    %173 = vmatprep.subr.mxu0 0.0
    %174 = vmatpush2.xpose.msra.mxu0 0.0
    %175 = vmatprep.subr.mxu0 0.0
    %176 = vmatpush2.xpose.msra.mxu0 0.0
    %177 = vmatprep.subr.mxu0 0.0
    %178 = vmatpush2.xpose.msra.mxu0 0.0
    %179 = vmatprep.subr.mxu0 0.0
    %180 = vmatpush2.xpose.msra.mxu0 0.0
    %181 = vmatprep.subr.mxu0 0.0
    %182 = vmatpush2.xpose.msra.mxu0 0.0
    %183 = vmatprep.subr.mxu0 0.0
    %184 = vmatpush2.xpose.msra.mxu0 0.0
    %185 = vmatprep.subr.mxu0 0.0
    %186 = vmatpush2.xpose.msra.mxu0 0.0
    %187 = vmatprep.subr.mxu0 0.0
    %188 = vmatpush2.xpose.msra.mxu0 0.0
    %189 = vmatprep.subr.mxu0 0.0
    %190 = vmatpush2.xpose.msra.mxu0 0.0
    %191 = vmatprep.subr.mxu0 0.0
    %192 = vmatpush2.xpose.msra.mxu0 0.0
    %193 = vmatprep.subr.mxu0 0.0
    %194 = vmatpush2.xpose.msra.mxu0 0.0
    %195 = vmatprep.subr.mxu0 0.0
    %196 = vmatpush2.xpose.msra.mxu0 0.0
    %197 = vmatprep.subr.mxu0 0.0
    %198 = vmatpush2.xpose.msra.mxu0 0.0
    %199 = vmatprep.subr.mxu0 0.0
    %200 = vmatpush2.xpose.msra.mxu0 0.0
    %201 = vmatprep.subr.mxu0 0.0
    %202 = vmatpush2.xpose.msra.mxu0 0.0
    %203 = vmatprep.mubr.f32.mxu0 0.0
    %204 = vmatmul.mubr.f32.gmra.mxu0 %v91
    %v205 = vpop.f32.mrf.mxu0
    %v206 = vadd.f32 0.0, %v205
    %v207 = vpop.f32.mrf.mxu0
    %208 = vmatprep.mubr.f32.mxu0 0.0
    %209 = vmatmul.mubr.f32.gmra.mxu0 %v92
    %v210 = vpop.f32.mrf.mxu0
    %v211 = vadd.f32 0.0, %v210
    %v212 = vpop.f32.mrf.mxu0
    %213 = vmatprep.mubr.f32.mxu0 0.0
    %214 = vmatmul.mubr.f32.gmra.mxu0 %v93
    %v215 = vpop.f32.mrf.mxu0
    %v216 = vadd.f32 0.0, %v215
    %v217 = vpop.f32.mrf.mxu0
    %218 = vmatprep.mubr.f32.mxu0 0.0
    %219 = vmatmul.mubr.f32.gmra.mxu0 %v94
    %v220 = vpop.f32.mrf.mxu0
    %v221 = vadd.f32 0.0, %v220
    %v222 = vpop.f32.mrf.mxu0
    %223 = vmatprep.mubr.f32.mxu0 0.0
    %224 = vmatmul.mubr.f32.gmra.mxu0 %v95
    %v225 = vpop.f32.mrf.mxu0
    %v226 = vadd.f32 0.0, %v225
    %v227 = vpop.f32.mrf.mxu0
    %228 = vmatprep.mubr.f32.mxu0 0.0
    %229 = vmatmul.mubr.f32.gmra.mxu0 %v96
    %v230 = vpop.f32.mrf.mxu0
    %v231 = vadd.f32 0.0, %v230
    %v232 = vpop.f32.mrf.mxu0
    %233 = vmatprep.mubr.f32.mxu0 0.0
    %234 = vmatmul.mubr.f32.gmra.mxu0 %v97
    %v235 = vpop.f32.mrf.mxu0
    %v236 = vadd.f32 0.0, %v235
    %v237 = vpop.f32.mrf.mxu0
    %238 = vmatprep.mubr.f32.mxu0 0.0
    %239 = vmatmul.mubr.f32.gmra.mxu0 %v98
    %v240 = vpop.f32.mrf.mxu0
    %v241 = vadd.f32 0.0, %v240
    %v242 = vpop.f32.mrf.mxu0
    %243 = vmatprep.mubr.f32.mxu0 0.0
    %244 = vmatmul.mubr.f32.gmra.mxu0 %v99
    %v245 = vpop.f32.mrf.mxu0
    %v246 = vadd.f32 0.0, %v245
    %v247 = vpop.f32.mrf.mxu0
    %248 = vmatprep.mubr.f32.mxu0 0.0
    %249 = vmatmul.mubr.f32.gmra.mxu0 %v100
    %v250 = vpop.f32.mrf.mxu0
    %v251 = vadd.f32 0.0, %v250
    %v252 = vpop.f32.mrf.mxu0
    %253 = vmatprep.mubr.f32.mxu0 0.0
    %254 = vmatmul.mubr.f32.gmra.mxu0 %v101
    %v255 = vpop.f32.mrf.mxu0
    %v256 = vadd.f32 0.0, %v255
    %v257 = vpop.f32.mrf.mxu0
    %258 = vmatprep.mubr.f32.mxu0 0.0
    %259 = vmatmul.mubr.f32.gmra.mxu0 %v102
    %v260 = vpop.f32.mrf.mxu0
    %v261 = vadd.f32 0.0, %v260
    %v262 = vpop.f32.mrf.mxu0
    %263 = vmatprep.mubr.f32.mxu0 0.0
    %264 = vmatmul.mubr.f32.gmra.mxu0 %v103
    %v265 = vpop.f32.mrf.mxu0
    %v266 = vadd.f32 0.0, %v265
    %v267 = vpop.f32.mrf.mxu0
    %268 = vmatprep.mubr.f32.mxu0 0.0
    %269 = vmatmul.mubr.f32.gmra.mxu0 %v104
    %v270 = vpop.f32.mrf.mxu0
    %v271 = vadd.f32 0.0, %v270
    %v272 = vpop.f32.mrf.mxu0
    %273 = vmatprep.mubr.f32.mxu0 0.0
    %274 = vmatmul.mubr.f32.gmra.mxu0 %v105
    %v275 = vpop.f32.mrf.mxu0
    %v276 = vadd.f32 0.0, %v275
    %v277 = vpop.f32.mrf.mxu0
    %278 = vmatprep.mubr.f32.mxu0 0.0
    %279 = vmatmul.mubr.f32.gmra.mxu0 %v106
    %v280 = vpop.f32.mrf.mxu0
    %v281 = vadd.f32 0.0, %v280
    %v282 = vpop.f32.mrf.mxu0
    %283 = vdwg.mxu0
    %284 = vmatprep.subr.mxu0 0.0
    %285 = vmatpush1.msra.mxu0 %v138
    %286 = vmatprep.subr.mxu0 0.0
    %287 = vmatpush1.msra.mxu0 %v137
    %288 = vmatprep.subr.mxu0 0.0
    %289 = vmatpush1.msra.mxu0 %v136
    %290 = vmatprep.subr.mxu0 0.0
    %291 = vmatpush1.msra.mxu0 %v135
    %292 = vmatprep.subr.mxu0 0.0
    %293 = vmatpush1.msra.mxu0 %v134
    %294 = vmatprep.subr.mxu0 0.0
    %295 = vmatpush1.msra.mxu0 %v133
    %296 = vmatprep.subr.mxu0 0.0
    %297 = vmatpush1.msra.mxu0 %v132
    %298 = vmatprep.subr.mxu0 0.0
    %299 = vmatpush1.msra.mxu0 %v131
    %300 = vmatprep.subr.mxu0 0.0
    %301 = vmatpush1.msra.mxu0 %v130
    %302 = vmatprep.subr.mxu0 0.0
    %303 = vmatpush1.msra.mxu0 %v129
    %304 = vmatprep.subr.mxu0 0.0
    %305 = vmatpush1.msra.mxu0 %v128
    %306 = vmatprep.subr.mxu0 0.0
    %307 = vmatpush1.msra.mxu0 %v127
    %308 = vmatprep.subr.mxu0 0.0
    %309 = vmatpush1.msra.mxu0 %v126
    %310 = vmatprep.subr.mxu0 0.0
    %311 = vmatpush1.msra.mxu0 %v125
    %312 = vmatprep.subr.mxu0 0.0
    %313 = vmatpush1.msra.mxu0 %v124
    %314 = vmatprep.subr.mxu0 0.0
    %315 = vmatpush1.msra.mxu0 %v123
    %316 = vmatprep.subr.mxu0 0.0
    %317 = vmatpush2.msra.mxu0 0.0
    %318 = vmatprep.subr.mxu0 0.0
    %319 = vmatpush2.msra.mxu0 0.0
    %320 = vmatprep.subr.mxu0 0.0
    %321 = vmatpush2.msra.mxu0 0.0
    %322 = vmatprep.subr.mxu0 0.0
    %323 = vmatpush2.msra.mxu0 0.0
    %324 = vmatprep.subr.mxu0 0.0
    %325 = vmatpush2.msra.mxu0 0.0
    %326 = vmatprep.subr.mxu0 0.0
    %327 = vmatpush2.msra.mxu0 0.0
    %328 = vmatprep.subr.mxu0 0.0
    %329 = vmatpush2.msra.mxu0 0.0
    %330 = vmatprep.subr.mxu0 0.0
    %331 = vmatpush2.msra.mxu0 0.0
    %332 = vmatprep.subr.mxu0 0.0
    %333 = vmatpush2.msra.mxu0 0.0
    %334 = vmatprep.subr.mxu0 0.0
    %335 = vmatpush2.msra.mxu0 0.0
    %336 = vmatprep.subr.mxu0 0.0
    %337 = vmatpush2.msra.mxu0 0.0
    %338 = vmatprep.subr.mxu0 0.0
    %339 = vmatpush2.msra.mxu0 0.0
    %340 = vmatprep.subr.mxu0 0.0
    %341 = vmatpush2.msra.mxu0 0.0
    %342 = vmatprep.subr.mxu0 0.0
    %343 = vmatpush2.msra.mxu0 0.0
    %344 = vmatprep.subr.mxu0 0.0
    %345 = vmatpush2.msra.mxu0 0.0
    %346 = vmatprep.subr.mxu0 0.0
    %347 = vmatpush2.msra.mxu0 0.0
    %348 = vmatprep.mubr.f32.mxu0 0.0
    %349 = vmatmul.mubr.f32.gmra.mxu0 %v206
    %v350 = vpop.f32.mrf.mxu0
    %v351 = vadd.f32 0.0, %v350
    %v352 = vpop.f32.mrf.mxu0
    %353 = vmatprep.mubr.f32.mxu0 0.0
    %354 = vmatmul.mubr.f32.gmra.mxu0 %v211
    %v355 = vpop.f32.mrf.mxu0
    %v356 = vadd.f32 0.0, %v355
    %v357 = vpop.f32.mrf.mxu0
    %358 = vmatprep.mubr.f32.mxu0 0.0
    %359 = vmatmul.mubr.f32.gmra.mxu0 %v216
    %v360 = vpop.f32.mrf.mxu0
    %v361 = vadd.f32 0.0, %v360
    %v362 = vpop.f32.mrf.mxu0
    %363 = vmatprep.mubr.f32.mxu0 0.0
    %364 = vmatmul.mubr.f32.gmra.mxu0 %v221
    %v365 = vpop.f32.mrf.mxu0
    %v366 = vadd.f32 0.0, %v365
    %v367 = vpop.f32.mrf.mxu0
    %368 = vmatprep.mubr.f32.mxu0 0.0
    %369 = vmatmul.mubr.f32.gmra.mxu0 %v226
    %v370 = vpop.f32.mrf.mxu0
    %v371 = vadd.f32 0.0, %v370
    %v372 = vpop.f32.mrf.mxu0
    %373 = vmatprep.mubr.f32.mxu0 0.0
    %374 = vmatmul.mubr.f32.gmra.mxu0 %v231
    %v375 = vpop.f32.mrf.mxu0
    %v376 = vadd.f32 0.0, %v375
    %v377 = vpop.f32.mrf.mxu0
    %378 = vmatprep.mubr.f32.mxu0 0.0
    %379 = vmatmul.mubr.f32.gmra.mxu0 %v236
    %v380 = vpop.f32.mrf.mxu0
    %v381 = vadd.f32 0.0, %v380
    %v382 = vpop.f32.mrf.mxu0
    %383 = vmatprep.mubr.f32.mxu0 0.0
    %384 = vmatmul.mubr.f32.gmra.mxu0 %v241
    %v385 = vpop.f32.mrf.mxu0
    %v386 = vadd.f32 0.0, %v385
    %v387 = vpop.f32.mrf.mxu0
    %388 = vmatprep.mubr.f32.mxu0 0.0
    %389 = vmatmul.mubr.f32.gmra.mxu0 %v246
    %v390 = vpop.f32.mrf.mxu0
    %v391 = vadd.f32 0.0, %v390
    %v392 = vpop.f32.mrf.mxu0
    %393 = vmatprep.mubr.f32.mxu0 0.0
    %394 = vmatmul.mubr.f32.gmra.mxu0 %v251
    %v395 = vpop.f32.mrf.mxu0
    %v396 = vadd.f32 0.0, %v395
    %v397 = vpop.f32.mrf.mxu0
    %398 = vmatprep.mubr.f32.mxu0 0.0
    %399 = vmatmul.mubr.f32.gmra.mxu0 %v256
    %v400 = vpop.f32.mrf.mxu0
    %v401 = vadd.f32 0.0, %v400
    %v402 = vpop.f32.mrf.mxu0
    %403 = vmatprep.mubr.f32.mxu0 0.0
    %404 = vmatmul.mubr.f32.gmra.mxu0 %v261
    %v405 = vpop.f32.mrf.mxu0
    %v406 = vadd.f32 0.0, %v405
    %v407 = vpop.f32.mrf.mxu0
    %408 = vmatprep.mubr.f32.mxu0 0.0
    %409 = vmatmul.mubr.f32.gmra.mxu0 %v266
    %v410 = vpop.f32.mrf.mxu0
    %v411 = vadd.f32 0.0, %v410
    %v412 = vpop.f32.mrf.mxu0
    %413 = vmatprep.mubr.f32.mxu0 0.0
    %414 = vmatmul.mubr.f32.gmra.mxu0 %v271
    %v415 = vpop.f32.mrf.mxu0
    %v416 = vadd.f32 0.0, %v415
    %v417 = vpop.f32.mrf.mxu0
    %418 = vmatprep.mubr.f32.mxu0 0.0
    %419 = vmatmul.mubr.f32.gmra.mxu0 %v276
    %v420 = vpop.f32.mrf.mxu0
    %v421 = vadd.f32 0.0, %v420
    %v422 = vpop.f32.mrf.mxu0
    %423 = vmatprep.mubr.f32.mxu0 0.0
    %424 = vmatmul.mubr.f32.gmra.mxu0 %v281
    %v425 = vpop.f32.mrf.mxu0
    %v426 = vadd.f32 0.0, %v425
    %v427 = vpop.f32.mrf.mxu0
    %428 = vdwg.mxu0
    %v429 = vand.u32 2147483647, %v351
    %v430 = vand.u32 2147483647, %v356
    %v431 = vand.u32 2147483647, %v361
    %v432 = vand.u32 2147483647, %v366
    %v433 = vand.u32 2147483647, %v371
    %v434 = vand.u32 2147483647, %v376
    %v435 = vand.u32 2147483647, %v381
    %v436 = vand.u32 2147483647, %v386
    %v437 = vand.u32 2147483647, %v391
    %v438 = vand.u32 2147483647, %v396
    %v439 = vand.u32 2147483647, %v401
    %v440 = vand.u32 2147483647, %v406
    %v441 = vand.u32 2147483647, %v411
    %v442 = vand.u32 2147483647, %v416
    %v443 = vand.u32 2147483647, %v421
    %v444 = vand.u32 2147483647, %v426
    %v445 = vlaneseq
    %v446 = vshrl.u32 %v445, 7
    %v447 = vadd.s32 %v446, 8
    %v448 = vadd.s32 %v446, 16
    %v449 = vadd.s32 %v446, 24
    %v450 = vadd.s32 %v446, 32
    %v451 = vadd.s32 %v446, 40
    %v452 = vadd.s32 %v446, 48
    %v453 = vadd.s32 %v446, 56
    %v454 = vadd.s32 %v446, 64
    %v455 = vadd.s32 %v446, 72
    %v456 = vadd.s32 %v446, 80
    %v457 = vadd.s32 %v446, 88
    %v458 = vadd.s32 %v446, 96
    %v459 = vadd.s32 %v446, 104
    %v460 = vadd.s32 %v446, 112
    %v461 = vadd.s32 %v446, 120
    %v462 = vlaneseq
    %v463 = vand.u32 %v462, 127
    %vm464 = vcmp.eq.s32.totalorder %v446, %v463
    %vm465 = vcmp.eq.s32.totalorder %v447, %v463
    %vm466 = vcmp.eq.s32.totalorder %v448, %v463
    %vm467 = vcmp.eq.s32.totalorder %v449, %v463
    %vm468 = vcmp.eq.s32.totalorder %v450, %v463
    %vm469 = vcmp.eq.s32.totalorder %v451, %v463
    %vm470 = vcmp.eq.s32.totalorder %v452, %v463
    %vm471 = vcmp.eq.s32.totalorder %v453, %v463
    %vm472 = vcmp.eq.s32.totalorder %v454, %v463
    %vm473 = vcmp.eq.s32.totalorder %v455, %v463
    %vm474 = vcmp.eq.s32.totalorder %v456, %v463
    %vm475 = vcmp.eq.s32.totalorder %v457, %v463
    %vm476 = vcmp.eq.s32.totalorder %v458, %v463
    %vm477 = vcmp.eq.s32.totalorder %v459, %v463
    %vm478 = vcmp.eq.s32.totalorder %v460, %v463
    %vm479 = vcmp.eq.s32.totalorder %v461, %v463
    %vm480 = vcmp.lt.s32.totalorder %v446, 32
    %vm481 = vcmp.lt.s32.totalorder %v447, 32
    %vm482 = vcmp.lt.s32.totalorder %v448, 32
    %vm483 = vcmp.lt.s32.totalorder %v449, 32
    %vm484 = vcmp.lt.s32.totalorder %v450, 32
    %vm485 = vcmp.lt.s32.totalorder %v451, 32
    %vm486 = vcmp.lt.s32.totalorder %v452, 32
    %vm487 = vcmp.lt.s32.totalorder %v453, 32
    %vm488 = vcmp.lt.s32.totalorder %v454, 32
    %vm489 = vcmp.lt.s32.totalorder %v455, 32
    %vm490 = vcmp.lt.s32.totalorder %v456, 32
    %vm491 = vcmp.lt.s32.totalorder %v457, 32
    %vm492 = vcmp.lt.s32.totalorder %v458, 32
    %vm493 = vcmp.lt.s32.totalorder %v459, 32
    %vm494 = vcmp.lt.s32.totalorder %v460, 32
    %vm495 = vcmp.lt.s32.totalorder %v461, 32
    %vm496 = vmand %vm464, %vm480
    %vm497 = vmand %vm465, %vm481
    %vm498 = vmand %vm466, %vm482
    %vm499 = vmand %vm467, %vm483
    %vm500 = vmand %vm468, %vm484
    %vm501 = vmand %vm469, %vm485
    %vm502 = vmand %vm470, %vm486
    %vm503 = vmand %vm471, %vm487
    %vm504 = vmand %vm472, %vm488
    %vm505 = vmand %vm473, %vm489
    %vm506 = vmand %vm474, %vm490
    %vm507 = vmand %vm475, %vm491
    %vm508 = vmand %vm476, %vm492
    %vm509 = vmand %vm477, %vm493
    %vm510 = vmand %vm478, %vm494
    %vm511 = vmand %vm479, %vm495
    %v512 = vsel %vm496, 1.0, %v429
    %v513 = vsel %vm497, 1.0, %v430
    %v514 = vsel %vm498, 1.0, %v431
    %v515 = vsel %vm499, 1.0, %v432
    %v516 = vsel %vm500, 1.0, %v433
    %v517 = vsel %vm501, 1.0, %v434
    %v518 = vsel %vm502, 1.0, %v435
    %v519 = vsel %vm503, 1.0, %v436
    %v520 = vsel %vm504, 1.0, %v437
    %v521 = vsel %vm505, 1.0, %v438
    %v522 = vsel %vm506, 1.0, %v439
    %v523 = vsel %vm507, 1.0, %v440
    %v524 = vsel %vm508, 1.0, %v441
    %v525 = vsel %vm509, 1.0, %v442
    %v526 = vsel %vm510, 1.0, %v443
    %v527 = vsel %vm511, 1.0, %v444
    %528 = vst [vmem:[#allocation8] sm:$0xff] %v512
    %529 = vst [vmem:[#allocation8 + $0x8] sm:$0xff] %v513
    %530 = vst [vmem:[#allocation8 + $0x10] sm:$0xff] %v514
    %531 = vst [vmem:[#allocation8 + $0x18] sm:$0xff] %v515
    %532 = vst [vmem:[#allocation8 + $0x20] sm:$0xff] %v516
    %533 = vst [vmem:[#allocation8 + $0x28] sm:$0xff] %v517
    %534 = vst [vmem:[#allocation8 + $0x30] sm:$0xff] %v518
    %535 = vst [vmem:[#allocation8 + $0x38] sm:$0xff] %v519
    %536 = vst [vmem:[#allocation8 + $0x40] sm:$0xff] %v520
    %537 = vst [vmem:[#allocation8 + $0x48] sm:$0xff] %v521
    %538 = vst [vmem:[#allocation8 + $0x50] sm:$0xff] %v522
    %539 = vst [vmem:[#allocation8 + $0x58] sm:$0xff] %v523
    %540 = vst [vmem:[#allocation8 + $0x60] sm:$0xff] %v524
    %541 = vst [vmem:[#allocation8 + $0x68] sm:$0xff] %v525
    %542 = vst [vmem:[#allocation8 + $0x70] sm:$0xff] %v526
    %543 = vst [vmem:[#allocation8 + $0x78] sm:$0xff] %v527
    %544 = vmatprep.subr.mxu0 0.0
    %545 = vmatpush1.xpose.msra.mxu0 %v527
    %546 = vmatprep.subr.mxu0 0.0
    %547 = vmatpush1.xpose.msra.mxu0 %v526
    %548 = vmatprep.subr.mxu0 0.0
    %549 = vmatpush1.xpose.msra.mxu0 %v525
    %550 = vmatprep.subr.mxu0 0.0
    %551 = vmatpush1.xpose.msra.mxu0 %v524
    %552 = vmatprep.subr.mxu0 0.0
    %553 = vmatpush1.xpose.msra.mxu0 %v523
    %554 = vmatprep.subr.mxu0 0.0
    %555 = vmatpush1.xpose.msra.mxu0 %v522
    %556 = vmatprep.subr.mxu0 0.0
    %557 = vmatpush1.xpose.msra.mxu0 %v521
    %558 = vmatprep.subr.mxu0 0.0
    %559 = vmatpush1.xpose.msra.mxu0 %v520
    %560 = vmatprep.subr.mxu0 0.0
    %561 = vmatpush1.xpose.msra.mxu0 %v519
    %562 = vmatprep.subr.mxu0 0.0
    %563 = vmatpush1.xpose.msra.mxu0 %v518
    %564 = vmatprep.subr.mxu0 0.0
    %565 = vmatpush1.xpose.msra.mxu0 %v517
    %566 = vmatprep.subr.mxu0 0.0
    %567 = vmatpush1.xpose.msra.mxu0 %v516
    %568 = vmatprep.subr.mxu0 0.0
    %569 = vmatpush1.xpose.msra.mxu0 %v515
    %570 = vmatprep.subr.mxu0 0.0
    %571 = vmatpush1.xpose.msra.mxu0 %v514
    %572 = vmatprep.subr.mxu0 0.0
    %573 = vmatpush1.xpose.msra.mxu0 %v513
    %574 = vmatprep.subr.mxu0 0.0
    %575 = vmatpush1.xpose.msra.mxu0 %v512
    %576 = vmatprep.subr.mxu0 0.0
    %577 = vmatpush2.xpose.msra.mxu0 0.0
    %578 = vmatprep.subr.mxu0 0.0
    %579 = vmatpush2.xpose.msra.mxu0 0.0
    %580 = vmatprep.subr.mxu0 0.0
    %581 = vmatpush2.xpose.msra.mxu0 0.0
    %582 = vmatprep.subr.mxu0 0.0
    %583 = vmatpush2.xpose.msra.mxu0 0.0
    %584 = vmatprep.subr.mxu0 0.0
    %585 = vmatpush2.xpose.msra.mxu0 0.0
    %586 = vmatprep.subr.mxu0 0.0
    %587 = vmatpush2.xpose.msra.mxu0 0.0
    %588 = vmatprep.subr.mxu0 0.0
    %589 = vmatpush2.xpose.msra.mxu0 0.0
    %590 = vmatprep.subr.mxu0 0.0
    %591 = vmatpush2.xpose.msra.mxu0 0.0
    %592 = vmatprep.subr.mxu0 0.0
    %593 = vmatpush2.xpose.msra.mxu0 0.0
    %594 = vmatprep.subr.mxu0 0.0
    %595 = vmatpush2.xpose.msra.mxu0 0.0
    %596 = vmatprep.subr.mxu0 0.0
    %597 = vmatpush2.xpose.msra.mxu0 0.0
    %598 = vmatprep.subr.mxu0 0.0
    %599 = vmatpush2.xpose.msra.mxu0 0.0
    %600 = vmatprep.subr.mxu0 0.0
    %601 = vmatpush2.xpose.msra.mxu0 0.0
    %602 = vmatprep.subr.mxu0 0.0
    %603 = vmatpush2.xpose.msra.mxu0 0.0
    %604 = vmatprep.subr.mxu0 0.0
    %605 = vmatpush2.xpose.msra.mxu0 0.0
    %606 = vmatprep.subr.mxu0 0.0
    %607 = vmatpush2.xpose.msra.mxu0 0.0
    %608 = vmatprep.mubr.f32.mxu0 0.0
    %609 = vmatmul.mubr.f32.gmra.mxu0 %v512
    %v610 = vpop.f32.mrf.mxu0
    %v611 = vadd.f32 0.0, %v610
    %v612 = vpop.f32.mrf.mxu0
    %613 = vmatprep.mubr.f32.mxu0 0.0
    %614 = vmatmul.mubr.f32.gmra.mxu0 %v513
    %v615 = vpop.f32.mrf.mxu0
    %v616 = vadd.f32 0.0, %v615
    %v617 = vpop.f32.mrf.mxu0
    %618 = vmatprep.mubr.f32.mxu0 0.0
    %619 = vmatmul.mubr.f32.gmra.mxu0 %v514
    %v620 = vpop.f32.mrf.mxu0
    %v621 = vadd.f32 0.0, %v620
    %v622 = vpop.f32.mrf.mxu0
    %623 = vmatprep.mubr.f32.mxu0 0.0
    %624 = vmatmul.mubr.f32.gmra.mxu0 %v515
    %v625 = vpop.f32.mrf.mxu0
    %v626 = vadd.f32 0.0, %v625
    %v627 = vpop.f32.mrf.mxu0
    %628 = vmatprep.mubr.f32.mxu0 0.0
    %629 = vmatmul.mubr.f32.gmra.mxu0 %v516
    %v630 = vpop.f32.mrf.mxu0
    %v631 = vadd.f32 0.0, %v630
    %v632 = vpop.f32.mrf.mxu0
    %633 = vmatprep.mubr.f32.mxu0 0.0
    %634 = vmatmul.mubr.f32.gmra.mxu0 %v517
    %v635 = vpop.f32.mrf.mxu0
    %v636 = vadd.f32 0.0, %v635
    %v637 = vpop.f32.mrf.mxu0
    %638 = vmatprep.mubr.f32.mxu0 0.0
    %639 = vmatmul.mubr.f32.gmra.mxu0 %v518
    %v640 = vpop.f32.mrf.mxu0
    %v641 = vadd.f32 0.0, %v640
    %v642 = vpop.f32.mrf.mxu0
    %643 = vmatprep.mubr.f32.mxu0 0.0
    %644 = vmatmul.mubr.f32.gmra.mxu0 %v519
    %v645 = vpop.f32.mrf.mxu0
    %v646 = vadd.f32 0.0, %v645
    %v647 = vpop.f32.mrf.mxu0
    %648 = vmatprep.mubr.f32.mxu0 0.0
    %649 = vmatmul.mubr.f32.gmra.mxu0 %v520
    %v650 = vpop.f32.mrf.mxu0
    %v651 = vadd.f32 0.0, %v650
    %v652 = vpop.f32.mrf.mxu0
    %653 = vmatprep.mubr.f32.mxu0 0.0
    %654 = vmatmul.mubr.f32.gmra.mxu0 %v521
    %v655 = vpop.f32.mrf.mxu0
    %v656 = vadd.f32 0.0, %v655
    %v657 = vpop.f32.mrf.mxu0
    %658 = vmatprep.mubr.f32.mxu0 0.0
    %659 = vmatmul.mubr.f32.gmra.mxu0 %v522
    %v660 = vpop.f32.mrf.mxu0
    %v661 = vadd.f32 0.0, %v660
    %v662 = vpop.f32.mrf.mxu0
    %663 = vmatprep.mubr.f32.mxu0 0.0
    %664 = vmatmul.mubr.f32.gmra.mxu0 %v523
    %v665 = vpop.f32.mrf.mxu0
    %v666 = vadd.f32 0.0, %v665
    %v667 = vpop.f32.mrf.mxu0
    %668 = vmatprep.mubr.f32.mxu0 0.0
    %669 = vmatmul.mubr.f32.gmra.mxu0 %v524
    %v670 = vpop.f32.mrf.mxu0
    %v671 = vadd.f32 0.0, %v670
    %v672 = vpop.f32.mrf.mxu0
    %673 = vmatprep.mubr.f32.mxu0 0.0
    %674 = vmatmul.mubr.f32.gmra.mxu0 %v525
    %v675 = vpop.f32.mrf.mxu0
    %v676 = vadd.f32 0.0, %v675
    %v677 = vpop.f32.mrf.mxu0
    %678 = vmatprep.mubr.f32.mxu0 0.0
    %679 = vmatmul.mubr.f32.gmra.mxu0 %v526
    %v680 = vpop.f32.mrf.mxu0
    %v681 = vadd.f32 0.0, %v680
    %v682 = vpop.f32.mrf.mxu0
    %683 = vmatprep.mubr.f32.mxu0 0.0
    %684 = vmatmul.mubr.f32.gmra.mxu0 %v527
    %v685 = vpop.f32.mrf.mxu0
    %v686 = vadd.f32 0.0, %v685
    %v687 = vpop.f32.mrf.mxu0
    %688 = vdwg.mxu0
    %v689 = vsel %vm464, 1.0, %v611
    %v690 = vsel %vm465, 1.0, %v616
    %v691 = vsel %vm466, 1.0, %v621
    %v692 = vsel %vm467, 1.0, %v626
    %v693 = vsel %vm468, 1.0, %v631
    %v694 = vsel %vm469, 1.0, %v636
    %v695 = vsel %vm470, 1.0, %v641
    %v696 = vsel %vm471, 1.0, %v646
    %v697 = vsel %vm472, 1.0, %v651
    %v698 = vsel %vm473, 1.0, %v656
    %v699 = vsel %vm474, 1.0, %v661
    %v700 = vsel %vm475, 1.0, %v666
    %v701 = vsel %vm476, 1.0, %v671
    %v702 = vsel %vm477, 1.0, %v676
    %v703 = vsel %vm478, 1.0, %v681
    %v704 = vsel %vm479, 1.0, %v686
    %705 = vst [vmem:[#allocation9] sm:$0xff] %v689
    %706 = vst [vmem:[#allocation9 + $0x8] sm:$0xff] %v690
    %707 = vst [vmem:[#allocation9 + $0x10] sm:$0xff] %v691
    %708 = vst [vmem:[#allocation9 + $0x18] sm:$0xff] %v692
    %709 = vst [vmem:[#allocation9 + $0x20] sm:$0xff] %v693
    %710 = vst [vmem:[#allocation9 + $0x28] sm:$0xff] %v694
    %711 = vst [vmem:[#allocation9 + $0x30] sm:$0xff] %v695
    %712 = vst [vmem:[#allocation9 + $0x38] sm:$0xff] %v696
    %713 = vst [vmem:[#allocation9 + $0x40] sm:$0xff] %v697
    %714 = vst [vmem:[#allocation9 + $0x48] sm:$0xff] %v698
    %715 = vst [vmem:[#allocation9 + $0x50] sm:$0xff] %v699
    %716 = vst [vmem:[#allocation9 + $0x58] sm:$0xff] %v700
    %717 = vst [vmem:[#allocation9 + $0x60] sm:$0xff] %v701
    %718 = vst [vmem:[#allocation9 + $0x68] sm:$0xff] %v702
    %719 = vst [vmem:[#allocation9 + $0x70] sm:$0xff] %v703
    %720 = vst [vmem:[#allocation9 + $0x78] sm:$0xff] %v704
    // Predicated region
    $region26: #{tpu_custom_call.1} parent=1 // pred_check
      _
    $region27: #{tpu_custom_call.1} parent=1 // pred_check_branch
      %722 = sbr.rel (0) target = $region29
    $region28: #{tpu_custom_call.1} parent=1 // pred_region
      %s724 = ssub.s32 2048, 2048
      %725 = vsyncadd [#allocation4], %s724
      %s726 = sshll.u32 [#allocation8], 4
      %s727 = int_to_ptr.vmem [resolvable:$true] %s726
      %732 = dma.vmem_to_hbm [thread:$0]  %s727, 2048, %s3, [#allocation4], 128, 128, 8
    $region29: #{tpu_custom_call.1} parent=1 // pred_fallthru
      _
    // Predicated region
    $region30: #{tpu_custom_call.1} parent=1 // pred_check
      _
    $region31: #{tpu_custom_call.1} parent=1 // pred_check_branch
      %734 = sbr.rel (0) target = $region33
    $region32: #{tpu_custom_call.1} parent=1 // pred_region
      %s736 = ssub.s32 2048, 2048
      %737 = vsyncadd [#allocation10], %s736
      %s738 = sshll.u32 [#allocation9], 4
      %s739 = int_to_ptr.vmem [resolvable:$true] %s738
      %744 = dma.vmem_to_hbm [thread:$0]  %s739, 2048, %s4, [#allocation10], 128, 128, 8
    $region33: #{tpu_custom_call.1} parent=1 // pred_fallthru
      _
    // Predicated region
    $region34: #{tpu_custom_call.1} parent=1 // pred_check
      _
    $region35: #{tpu_custom_call.1} parent=1 // pred_check_branch
      %746 = sbr.rel (0) target = $region37
    $region36: #{tpu_custom_call.1} parent=1 // pred_region
      %747 = dma.done [#allocation4], 2048
    $region37: #{tpu_custom_call.1} parent=1 // pred_fallthru
      _
    // Predicated region
    $region38: #{tpu_custom_call.1} parent=1 // pred_check
      _
    $region39: #{tpu_custom_call.1} parent=1 // pred_check_branch
      %749 = sbr.rel (0) target = $region41
    $region40: #{tpu_custom_call.1} parent=1 // pred_region
      %750 = dma.done [#allocation10], 2048
    $region41: #{tpu_custom_call.1} parent=1 // pred_fallthru
      _
    %751 = vsyncpa [#allocation3], 1
    %752 = vsyncpa [#allocation6], 1
    %753 = vsyncpa [#allocation4], 1
    %754 = vsyncpa [#allocation10], 1

</llo_original>
